<compile_context>
chip_gen: v7x
topology: tpu7x:2x2x1
jax: 0.10.0
libtpu: 0.0.40
codegen_flags: <defaults>
</compile_context>

<pallas_src>
import functools
import math

import jax
import jax.numpy as jnp
from jax.experimental import pallas as pl
from jax.experimental.pallas import tpu as pltpu


def shufflenet_kernel(x_ref, ws1_ref, bs1_ref, wdw_ref, b2b_ref,
                      ws2_ref, bs2_ref, masks_ref, out_ref, z_ref, *, wdim):
    """One block of Nb images per grid step; every image is a (C, H*W) slab."""
    Nb, _, HW = x_ref.shape
    M = wdw_ref.shape[0]
    W = wdim

    # Constant-index_map blocks: same block every grid step, fetched once.
    ws1 = ws1_ref[...]                              # (2M, C)  fused stage-1 weight
    bs1 = bs1_ref[...]                              # (2M, 1)  f32
    wdw = wdw_ref[...].astype(jnp.float32)          # (M, 9)   f32 on the VPU (v5e: no bf16 VALU)
    b2b = b2b_ref[...]                              # (M, 1)   f32
    ws2 = ws2_ref[...]                              # (2M, 2M) shuffle folded into row order
    bs2 = bs2_ref[...]                              # (2M, 1)  f32
    msk = masks_ref[...]                            # (4, HW)  f32 {0,1} boundary masks
    c_lo, c_hi = msk[0:1, :], msk[1:2, :]           # col >= 1 , col <= W-2
    r_lo, r_hi = msk[2:3, :], msk[3:4, :]           # row >= 1 , row <= H-2

    # Depthwise tap columns, hoisted out of the image loop.
    w00, w01, w02 = wdw[:, 0:1], wdw[:, 1:2], wdw[:, 2:3]
    w10, w11, w12 = wdw[:, 3:4], wdw[:, 4:5], wdw[:, 5:6]
    w20, w21, w22 = wdw[:, 6:7], wdw[:, 7:8], wdw[:, 8:9]

    for n in range(Nb):                             # small static unroll over the sub-batch
        x = x_ref[n]                                # (C, HW) NCHW slab (f32 or bf16)

        # ---- stage 1: branch1 + branch2 1x1 convs (BN folded) + ReLU, one matmul
        y = jnp.dot(ws1, x, preferred_element_type=jnp.float32)      # (2M, HW), f32 acc
        y = jnp.maximum(y + bs1, 0.0)
        z_ref[:M, :] = y[:M, :].astype(z_ref.dtype)                  # a1 rows of stage-2 input
        t = y[M:, :]                                                 # branch2 intermediate, f32

        # ---- branch2 depthwise 3x3 (pad=1): 2 col rolls + 2 row rolls + masks
        h_l = pltpu.roll(t, shift=1, axis=1) * c_lo                  # source col c-1
        h_r = pltpu.roll(t, shift=HW - 1, axis=1) * c_hi             # source col c+1
        s0 = h_l * w00 + t * w01 + h_r * w02                         # taps of source row r-1
        s1 = h_l * w10 + t * w11 + h_r * w12                         # taps of source row r
        s2 = h_l * w20 + t * w21 + h_r * w22                         # taps of source row r+1
        acc = s1
        acc = acc + pltpu.roll(s0, shift=W, axis=1) * r_lo
        acc = acc + pltpu.roll(s2, shift=HW - W, axis=1) * r_hi
        z_ref[M:, :] = (acc + b2b).astype(z_ref.dtype)               # dwb rows of stage-2 input

        # ---- stage 2: 1x1 conv + branch1 passthrough + channel shuffle (in ws2 rows)
        #      + bias + ReLU, then the identity residual add.  relu(a1 rows) is a no-op.
        o = jnp.dot(ws2, z_ref[...], preferred_element_type=jnp.float32)
        o = jnp.maximum(o + bs2, 0.0)
        out_ref[n] = (o + x.astype(jnp.float32)).astype(out_ref.dtype)


def _pick_images_per_step(n, c, hw, itemsize, budget_bytes):
    """Largest divisor of n whose double-buffered in+out blocks fit the budget,
    keeping >= 2 grid steps when n >= 2 (one per v7x TensorCore)."""
    best = 1
    for nb in range(1, n + 1):
        if n % nb:
            continue
        if n >= 2 and n // nb < 2:
            continue
        if 2 * 2 * nb * c * hw * itemsize <= budget_bytes:   # 2 pipeline buffers x (in + out)
            best = nb
    return best


def shufflenet_block(x_nchw, fp, *, compute_dtype=jnp.float32,
                     images_per_step=None, vmem_budget_bytes=8 << 20):
    """ShufflenetBlock forward (stride=1, downsample=None) with fused params."""
    N, C, H, W = x_nchw.shape
    M = fp['wdw'].shape[0]
    assert fp['ws1'].shape[0] == C, "identity residual requires 2*mid_channels == inplanes"
    HW = H * W

    # Free reshape: (N, C, H, W) contiguous -> (N, C, H*W); channel-major slabs.
    # bf16 here halves the dominant x-in/out HBM traffic (matmul acc stays f32).
    x = x_nchw.reshape(N, C, HW).astype(compute_dtype)
    itemsize = jnp.dtype(compute_dtype).itemsize

    if images_per_step is None:
        # Budget default targets v7x's smaller VMEM; raise it on v6e (128 MiB VMEM)
        # for even larger per-step blocks.
        images_per_step = _pick_images_per_step(N, C, HW, itemsize, vmem_budget_bytes)
    nb = images_per_step
    assert N % nb == 0, "images_per_step must divide the batch"
    steps = N // nb

    # Precomputed depthwise boundary masks on the flattened spatial axis:
    # no per-step iota / integer div-mod on the VPU, valid for any W.
    pos = jnp.arange(HW, dtype=jnp.int32)
    col, row = pos % W, pos // W
    masks = jnp.stack([col >= 1, col <= W - 2, row >= 1, row <= H - 2],
                      axis=0).astype(jnp.float32)              # (4, HW)

    x_spec = pl.BlockSpec((nb, C, HW), lambda i: (i, 0, 0))
    if nb * C * HW * itemsize < (64 << 10) and steps > 3:
        # Tiny blocks on a long grid: deepen input pipelining to hide DMA issue latency.
        x_spec = pl.BlockSpec((nb, C, HW), lambda i: (i, 0, 0),
                              pipeline_mode=pl.Buffered(3))

    # Constant blocks -> Pallas fetches them once (block index never changes);
    # if a Mosaic dump ever shows per-step re-DMA, load them into VMEM scratch
    # under @pl.when(pl.program_id(0) == 0) instead.
    wmap = lambda i: (0, 0)
    grid_spec = pltpu.PrefetchScalarGridSpec(
        num_scalar_prefetch=0,
        grid=(steps,),
        in_specs=[
            x_spec,                                        # (nb, C, HW) activations
            pl.BlockSpec(fp['ws1'].shape, wmap),           # fused stage-1 weight
            pl.BlockSpec(fp['bs1'].shape, wmap),
            pl.BlockSpec(fp['wdw'].shape, wmap),           # depthwise taps (M, 9)
            pl.BlockSpec(fp['b2b'].shape, wmap),
            pl.BlockSpec(fp['ws2'].shape, wmap),           # fused stage-2 weight
            pl.BlockSpec(fp['bs2'].shape, wmap),
            pl.BlockSpec(masks.shape, wmap),               # depthwise boundary masks
        ],
        out_specs=pl.BlockSpec((nb, C, HW), lambda i: (i, 0, 0)),
        scratch_shapes=[pltpu.VMEM((2 * M, HW), compute_dtype)],   # stage-2 input slab
    )

    out = pl.pallas_call(
        functools.partial(shufflenet_kernel, wdim=W),
        out_shape=jax.ShapeDtypeStruct((N, C, HW), compute_dtype),
        grid_spec=grid_spec,
        compiler_params=pltpu.CompilerParams(
            dimension_semantics=("parallel",),             # sub-batches are independent
            vmem_limit_bytes=32 * 1024 * 1024),            # safe on v5e/v6e/v7x
    )(x, fp['ws1'], fp['bs1'], fp['wdw'], fp['b2b'], fp['ws2'], fp['bs2'], masks)

    return out.reshape(N, C, H, W)                         # already NCHW


def prepare_params(p, weight_dtype=jnp.float32):
    """One-time weight transform: fold BN scales, transpose for left-multiply,
    build the block-diagonal stage-1 weight and the shuffled stage-2 weight.
    Matmul/depthwise weights may be cast to bf16 (HBM savings); biases stay f32
    because they are added after f32 accumulation."""
    C2, M = p['w1'].shape
    C = 2 * C2
    f32 = jnp.float32

    # stage 1: [a1 ; t] = relu(Ws1 @ x + bs1), block-diagonal over x1 / x2
    w1s = (p['w1'] * p['s1']).astype(f32)                    # (C2, M)
    w2as = (p['w2a'] * p['s2a']).astype(f32)                 # (C2, M)
    ws1 = jnp.zeros((2 * M, C), f32)
    ws1 = ws1.at[:M, :C2].set(w1s.T)
    ws1 = ws1.at[M:, C2:].set(w2as.T)
    bs1 = jnp.concatenate([p['b1'].reshape(M, 1), p['b2a'].reshape(M, 1)],
                          axis=0).astype(f32)

    # depthwise: fold BN scale into the 9 taps; channel on sublanes, tap on lanes
    wdw = (p['wdw'] * p['s2b']).T.astype(f32)                # (M, 9)
    b2b = p['b2b'].reshape(M, 1).astype(f32)

    # stage 2: out = relu(Ws2 @ [a1 ; dwb] + bs2); rows already in shuffled order:
    #   out[2j]   = a1[j]                     (identity passthrough, relu no-op)
    #   out[2j+1] = relu(w2c[:,j]·dwb + b2c[j])
    w2cs = (p['w2c'] * p['s2c']).astype(f32)                 # (M, M) [in, out]
    top = jnp.concatenate([jnp.eye(M, dtype=f32), jnp.zeros((M, M), f32)], axis=1)
    bot = jnp.concatenate([jnp.zeros((M, M), f32), w2cs.T], axis=1)
    ws2 = jnp.stack([top, bot], axis=1).reshape(2 * M, 2 * M)
    bs2 = jnp.stack([jnp.zeros((M,), f32), p['b2c'].reshape(M)], axis=1).reshape(2 * M, 1)

    return dict(ws1=ws1.astype(weight_dtype), bs1=bs1,
                wdw=wdw.astype(weight_dtype), b2b=b2b,
                ws2=ws2.astype(weight_dtype), bs2=bs2)


def reference(x_nchw, p):
    """Pure-JAX (XLA) reference of the same forward pass, for verification."""
    hi = jax.lax.Precision.HIGHEST
    x = jnp.transpose(x_nchw, (0, 2, 3, 1)).astype(jnp.float32)
    N, H, W, C = x.shape
    C2 = C // 2
    M = p['w1'].shape[1]
    x1, x2 = x[..., :C2], x[..., C2:]
    a1 = jax.nn.relu(jnp.einsum('nhwc,cm->nhwm', x1, p['w1'], precision=hi)
                     * p['s1'] + p['b1'])
    t = jax.nn.relu(jnp.einsum('nhwc,cm->nhwm', x2, p['w2a'], precision=hi)
                    * p['s2a'] + p['b2a'])
    wdw_hwio = p['wdw'].reshape(3, 3, 1, M)
    dw = jax.lax.conv_general_dilated(
        t, wdw_hwio, (1, 1), ((1, 1), (1, 1)),
        dimension_numbers=('NHWC', 'HWIO', 'NHWC'),
        feature_group_count=M, precision=hi)
    dwb = dw * p['s2b'] + p['b2b']
    a2 = jax.nn.relu(jnp.einsum('nhwm,mk->nhwk', dwb, p['w2c'], precision=hi)
                     * p['s2c'] + p['b2c'])
    cat = jnp.concatenate([a1, a2], axis=-1)
    out = cat.reshape(N, H, W, 2, M).transpose(0, 1, 2, 4, 3).reshape(N, H, W, 2 * M) + x
    return jnp.transpose(out, (0, 3, 1, 2))


def init_params(key, inplanes, planes):
    """Deterministic synthetic weights; BatchNorm folded to scale/bias (eps=1e-5)."""
    mid = planes * 4 // 2          # ShufflenetBlock.expansion = 4
    c2 = inplanes // 2
    ks = jax.random.split(key, 8)

    def conv_w(k, shape, fan_in):
        return jax.random.normal(k, shape, jnp.float32) / math.sqrt(float(fan_in))

    def bn(k):
        k1, k2, k3, k4 = jax.random.split(k, 4)
        gamma = 1.0 + 0.1 * jax.random.normal(k1, (1, mid), jnp.float32)
        beta = 0.1 * jax.random.normal(k2, (1, mid), jnp.float32)
        mean = 0.1 * jax.random.normal(k3, (1, mid), jnp.float32)
        var = jax.random.uniform(k4, (1, mid), jnp.float32, minval=0.5, maxval=1.5)
        scale = gamma / jnp.sqrt(var + 1e-5)
        bias = beta - mean * scale
        return scale, bias

    p = {}
    p['w1'] = conv_w(ks[0], (c2, mid), c2)            # branch1 1x1 (in, out)
    p['s1'], p['b1'] = bn(ks[1])
    p['w2a'] = conv_w(ks[2], (c2, mid), c2)           # branch2 first 1x1
    p['s2a'], p['b2a'] = bn(ks[3])
    p['wdw'] = conv_w(ks[4], (9, mid), 9)             # depthwise 3x3 [ky*3+kx, ch]
    p['s2b'], p['b2b'] = bn(ks[5])
    p['w2c'] = conv_w(ks[6], (mid, mid), mid)         # branch2 second 1x1
    p['s2c'], p['b2c'] = bn(ks[7])
    return p


if __name__ == "__main__":
    # stride=1 block: inplanes = 2 * mid_channels = 2 * (planes * 4 // 2) = 4 * planes
    inplanes, planes = 16, 4
    N, H, W = 4, 16, 16            # N=4 -> 2 images per grid step, 2 steps (one per v7x TC)

    key = jax.random.PRNGKey(0)
    kx, kp = jax.random.split(key)
    x = jax.random.normal(kx, (N, inplanes, H, W), jnp.float32)
    params = init_params(kp, inplanes, planes)
    ref = reference(x, params)

    # 1) all-f32 path: tightened tolerance so structural regressions are visible.
    fused32 = prepare_params(params, jnp.float32)
    out32 = jax.block_until_ready(shufflenet_block(x, fused32, compute_dtype=jnp.float32))
    assert out32.shape == (N, inplanes, H, W)
    if not jnp.allclose(out32, ref, atol=1e-3, rtol=1e-3):
        max_err = float(jnp.max(jnp.abs(out32 - ref)))
        raise SystemExit("f32 mismatch vs reference: max abs err %e" % max_err)

    # 2) bf16 activations/weights (f32 accumulation & biases): the recommended
    #    memory-bound production config; loose tolerance accounts for the bf16 casts.
    fusedbf = prepare_params(params, jnp.bfloat16)
    outbf = jax.block_until_ready(shufflenet_block(x, fusedbf, compute_dtype=jnp.bfloat16))
    if not jnp.allclose(outbf.astype(jnp.float32), ref, atol=1e-1, rtol=1e-1):
        max_err = float(jnp.max(jnp.abs(outbf.astype(jnp.float32) - ref)))
        raise SystemExit("bf16 mismatch vs reference: max abs err %e" % max_err)

    print("KERNEL_OK")
</pallas_src>

<mosaic_0001>
module attributes {stable_mosaic.version = 11 : i64} {
  func.func @shufflenet_kernel(%arg0: i32, %arg1: memref<2x16x256xf32, #tpu.memory_space<vmem>>, %arg2: memref<16x16xf32, #tpu.memory_space<vmem>>, %arg3: memref<16x1xf32, #tpu.memory_space<vmem>>, %arg4: memref<8x9xf32, #tpu.memory_space<vmem>>, %arg5: memref<8x1xf32, #tpu.memory_space<vmem>>, %arg6: memref<16x16xf32, #tpu.memory_space<vmem>>, %arg7: memref<16x1xf32, #tpu.memory_space<vmem>>, %arg8: memref<4x256xf32, #tpu.memory_space<vmem>>, %arg9: memref<2x16x256xf32, #tpu.memory_space<vmem>>, %arg10: memref<16x256xf32, #tpu.memory_space<vmem>>) attributes {dimension_semantics = [#tpu.dimension_semantics<parallel>], iteration_bounds = array<i64: 2>, scalar_prefetch = 0 : i64, scratch_operands = 1 : i64, tpu.core_type = #tpu.core_type<tc>, window_params = [{transform_indices = @transform_0, window_bounds = array<i64: 2, 16, 256>}, {pipeline_mode = #tpu.pipeline_mode<synchronous>, transform_indices = @transform_1, window_bounds = array<i64: 16, 16>}, {pipeline_mode = #tpu.pipeline_mode<synchronous>, transform_indices = @transform_2, window_bounds = array<i64: 16, 1>}, {pipeline_mode = #tpu.pipeline_mode<synchronous>, transform_indices = @transform_3, window_bounds = array<i64: 8, 9>}, {pipeline_mode = #tpu.pipeline_mode<synchronous>, transform_indices = @transform_4, window_bounds = array<i64: 8, 1>}, {pipeline_mode = #tpu.pipeline_mode<synchronous>, transform_indices = @transform_5, window_bounds = array<i64: 16, 16>}, {pipeline_mode = #tpu.pipeline_mode<synchronous>, transform_indices = @transform_6, window_bounds = array<i64: 16, 1>}, {pipeline_mode = #tpu.pipeline_mode<synchronous>, transform_indices = @transform_7, window_bounds = array<i64: 4, 256>}, {transform_indices = @transform_8, window_bounds = array<i64: 2, 16, 256>}]} {
    %c0 = arith.constant 0 : index
    %c0_0 = arith.constant 0 : index
    %0 = vector.load %arg2[%c0, %c0_0] : memref<16x16xf32, #tpu.memory_space<vmem>>, vector<16x16xf32>
    %c0_1 = arith.constant 0 : index
    %c0_2 = arith.constant 0 : index
    %1 = vector.load %arg3[%c0_1, %c0_2] : memref<16x1xf32, #tpu.memory_space<vmem>>, vector<16x1xf32>
    %c0_3 = arith.constant 0 : index
    %c0_4 = arith.constant 0 : index
    %2 = vector.load %arg4[%c0_3, %c0_4] : memref<8x9xf32, #tpu.memory_space<vmem>>, vector<8x9xf32>
    %c0_5 = arith.constant 0 : index
    %c0_6 = arith.constant 0 : index
    %3 = vector.load %arg5[%c0_5, %c0_6] : memref<8x1xf32, #tpu.memory_space<vmem>>, vector<8x1xf32>
    %c0_7 = arith.constant 0 : index
    %c0_8 = arith.constant 0 : index
    %4 = vector.load %arg6[%c0_7, %c0_8] : memref<16x16xf32, #tpu.memory_space<vmem>>, vector<16x16xf32>
    %c0_9 = arith.constant 0 : index
    %c0_10 = arith.constant 0 : index
    %5 = vector.load %arg7[%c0_9, %c0_10] : memref<16x1xf32, #tpu.memory_space<vmem>>, vector<16x1xf32>
    %c0_11 = arith.constant 0 : index
    %c0_12 = arith.constant 0 : index
    %6 = vector.load %arg8[%c0_11, %c0_12] : memref<4x256xf32, #tpu.memory_space<vmem>>, vector<4x256xf32>
    %7 = vector.extract_strided_slice %6 {offsets = [0, 0], sizes = [1, 256], strides = [1, 1]} : vector<4x256xf32> to vector<1x256xf32>
    %8 = vector.extract_strided_slice %6 {offsets = [1, 0], sizes = [1, 256], strides = [1, 1]} : vector<4x256xf32> to vector<1x256xf32>
    %9 = vector.extract_strided_slice %6 {offsets = [2, 0], sizes = [1, 256], strides = [1, 1]} : vector<4x256xf32> to vector<1x256xf32>
    %10 = vector.extract_strided_slice %6 {offsets = [3, 0], sizes = [1, 256], strides = [1, 1]} : vector<4x256xf32> to vector<1x256xf32>
    %11 = vector.extract_strided_slice %2 {offsets = [0, 0], sizes = [8, 1], strides = [1, 1]} : vector<8x9xf32> to vector<8x1xf32>
    %12 = vector.extract_strided_slice %2 {offsets = [0, 1], sizes = [8, 1], strides = [1, 1]} : vector<8x9xf32> to vector<8x1xf32>
    %13 = vector.extract_strided_slice %2 {offsets = [0, 2], sizes = [8, 1], strides = [1, 1]} : vector<8x9xf32> to vector<8x1xf32>
    %14 = vector.extract_strided_slice %2 {offsets = [0, 3], sizes = [8, 1], strides = [1, 1]} : vector<8x9xf32> to vector<8x1xf32>
    %15 = vector.extract_strided_slice %2 {offsets = [0, 4], sizes = [8, 1], strides = [1, 1]} : vector<8x9xf32> to vector<8x1xf32>
    %16 = vector.extract_strided_slice %2 {offsets = [0, 5], sizes = [8, 1], strides = [1, 1]} : vector<8x9xf32> to vector<8x1xf32>
    %17 = vector.extract_strided_slice %2 {offsets = [0, 6], sizes = [8, 1], strides = [1, 1]} : vector<8x9xf32> to vector<8x1xf32>
    %18 = vector.extract_strided_slice %2 {offsets = [0, 7], sizes = [8, 1], strides = [1, 1]} : vector<8x9xf32> to vector<8x1xf32>
    %19 = vector.extract_strided_slice %2 {offsets = [0, 8], sizes = [8, 1], strides = [1, 1]} : vector<8x9xf32> to vector<8x1xf32>
    %c0_13 = arith.constant 0 : index
    %c0_14 = arith.constant 0 : index
    %c0_15 = arith.constant 0 : index
    %20 = vector.load %arg1[%c0_13, %c0_14, %c0_15] : memref<2x16x256xf32, #tpu.memory_space<vmem>>, vector<1x16x256xf32>
    %21 = vector.shape_cast %20 : vector<1x16x256xf32> to vector<16x256xf32>
    %cst = arith.constant dense<0.000000e+00> : vector<16x256xf32>
    %22 = tpu.matmul %0, %21, %cst {dimension_numbers = #tpu.dot_dimension_numbers<[1], [0], [0], [1], [0, 0, 1, 1], [], []>} : vector<16x16xf32>, vector<16x256xf32>, vector<16x256xf32> -> vector<16x256xf32>
    %23 = vector.broadcast %1 : vector<16x1xf32> to vector<16x256xf32>
    %24 = arith.addf %22, %23 : vector<16x256xf32>
    %cst_16 = arith.constant 0.000000e+00 : f32
    %25 = vector.broadcast %cst_16 : f32 to vector<16x256xf32>
    %26 = arith.maximumf %24, %25 : vector<16x256xf32>
    %27 = vector.extract_strided_slice %26 {offsets = [0, 0], sizes = [8, 256], strides = [1, 1]} : vector<16x256xf32> to vector<8x256xf32>
    %c0_17 = arith.constant 0 : index
    %c0_18 = arith.constant 0 : index
    %28 = vector.load %arg10[%c0_17, %c0_18] : memref<16x256xf32, #tpu.memory_space<vmem>>, vector<8x256xf32>
    tpu.vector_store %arg10[%c0_17, %c0_18], %27 {strides = array<i32>} : memref<16x256xf32, #tpu.memory_space<vmem>>, vector<8x256xf32>,
    %29 = vector.extract_strided_slice %26 {offsets = [8, 0], sizes = [8, 256], strides = [1, 1]} : vector<16x256xf32> to vector<8x256xf32>
    %c1_i32 = arith.constant 1 : i32
    %30 = tpu.dynamic_rotate %29 by %c1_i32 dim 1 : vector<8x256xf32>, i32 -> vector<8x256xf32>
    %31 = vector.broadcast %7 : vector<1x256xf32> to vector<8x256xf32>
    %32 = arith.mulf %30, %31 : vector<8x256xf32>
    %c255_i32 = arith.constant 255 : i32
    %33 = tpu.dynamic_rotate %29 by %c255_i32 dim 1 : vector<8x256xf32>, i32 -> vector<8x256xf32>
    %34 = vector.broadcast %8 : vector<1x256xf32> to vector<8x256xf32>
    %35 = arith.mulf %33, %34 : vector<8x256xf32>
    %36 = vector.broadcast %11 : vector<8x1xf32> to vector<8x256xf32>
    %37 = arith.mulf %32, %36 : vector<8x256xf32>
    %38 = vector.broadcast %12 : vector<8x1xf32> to vector<8x256xf32>
    %39 = arith.mulf %29, %38 : vector<8x256xf32>
    %40 = arith.addf %37, %39 : vector<8x256xf32>
    %41 = vector.broadcast %13 : vector<8x1xf32> to vector<8x256xf32>
    %42 = arith.mulf %35, %41 : vector<8x256xf32>
    %43 = arith.addf %40, %42 : vector<8x256xf32>
    %44 = vector.broadcast %14 : vector<8x1xf32> to vector<8x256xf32>
    %45 = arith.mulf %32, %44 : vector<8x256xf32>
    %46 = vector.broadcast %15 : vector<8x1xf32> to vector<8x256xf32>
    %47 = arith.mulf %29, %46 : vector<8x256xf32>
    %48 = arith.addf %45, %47 : vector<8x256xf32>
    %49 = vector.broadcast %16 : vector<8x1xf32> to vector<8x256xf32>
    %50 = arith.mulf %35, %49 : vector<8x256xf32>
    %51 = arith.addf %48, %50 : vector<8x256xf32>
    %52 = vector.broadcast %17 : vector<8x1xf32> to vector<8x256xf32>
    %53 = arith.mulf %32, %52 : vector<8x256xf32>
    %54 = vector.broadcast %18 : vector<8x1xf32> to vector<8x256xf32>
    %55 = arith.mulf %29, %54 : vector<8x256xf32>
    %56 = arith.addf %53, %55 : vector<8x256xf32>
    %57 = vector.broadcast %19 : vector<8x1xf32> to vector<8x256xf32>
    %58 = arith.mulf %35, %57 : vector<8x256xf32>
    %59 = arith.addf %56, %58 : vector<8x256xf32>
    %c16_i32 = arith.constant 16 : i32
    %60 = tpu.dynamic_rotate %43 by %c16_i32 dim 1 : vector<8x256xf32>, i32 -> vector<8x256xf32>
    %61 = vector.broadcast %9 : vector<1x256xf32> to vector<8x256xf32>
    %62 = arith.mulf %60, %61 : vector<8x256xf32>
    %63 = arith.addf %51, %62 : vector<8x256xf32>
    %c240_i32 = arith.constant 240 : i32
    %64 = tpu.dynamic_rotate %59 by %c240_i32 dim 1 : vector<8x256xf32>, i32 -> vector<8x256xf32>
    %65 = vector.broadcast %10 : vector<1x256xf32> to vector<8x256xf32>
    %66 = arith.mulf %64, %65 : vector<8x256xf32>
    %67 = arith.addf %63, %66 : vector<8x256xf32>
    %68 = vector.broadcast %3 : vector<8x1xf32> to vector<8x256xf32>
    %69 = arith.addf %67, %68 : vector<8x256xf32>
    %c8 = arith.constant 8 : index
    %c0_19 = arith.constant 0 : index
    %70 = vector.load %arg10[%c8, %c0_19] : memref<16x256xf32, #tpu.memory_space<vmem>>, vector<8x256xf32>
    tpu.vector_store %arg10[%c8, %c0_19], %69 {strides = array<i32>} : memref<16x256xf32, #tpu.memory_space<vmem>>, vector<8x256xf32>,
    %c0_20 = arith.constant 0 : index
    %c0_21 = arith.constant 0 : index
    %71 = vector.load %arg10[%c0_20, %c0_21] : memref<16x256xf32, #tpu.memory_space<vmem>>, vector<16x256xf32>
    %cst_22 = arith.constant dense<0.000000e+00> : vector<16x256xf32>
    %72 = tpu.matmul %4, %71, %cst_22 {dimension_numbers = #tpu.dot_dimension_numbers<[1], [0], [0], [1], [0, 0, 1, 1], [], []>} : vector<16x16xf32>, vector<16x256xf32>, vector<16x256xf32> -> vector<16x256xf32>
    %73 = vector.broadcast %5 : vector<16x1xf32> to vector<16x256xf32>
    %74 = arith.addf %72, %73 : vector<16x256xf32>
    %cst_23 = arith.constant 0.000000e+00 : f32
    %75 = vector.broadcast %cst_23 : f32 to vector<16x256xf32>
    %76 = arith.maximumf %74, %75 : vector<16x256xf32>
    %77 = arith.addf %76, %21 : vector<16x256xf32>
    %c0_24 = arith.constant 0 : index
    %c0_25 = arith.constant 0 : index
    %c0_26 = arith.constant 0 : index
    %78 = vector.load %arg9[%c0_24, %c0_25, %c0_26] : memref<2x16x256xf32, #tpu.memory_space<vmem>>, vector<1x16x256xf32>
    %79 = vector.shape_cast %78 : vector<1x16x256xf32> to vector<16x256xf32>
    %80 = vector.shape_cast %77 : vector<16x256xf32> to vector<1x16x256xf32>
    tpu.vector_store %arg9[%c0_24, %c0_25, %c0_26], %80 {strides = array<i32>} : memref<2x16x256xf32, #tpu.memory_space<vmem>>, vector<1x16x256xf32>,
    %c1 = arith.constant 1 : index
    %c0_27 = arith.constant 0 : index
    %c0_28 = arith.constant 0 : index
    %81 = vector.load %arg1[%c1, %c0_27, %c0_28] : memref<2x16x256xf32, #tpu.memory_space<vmem>>, vector<1x16x256xf32>
    %82 = vector.shape_cast %81 : vector<1x16x256xf32> to vector<16x256xf32>
    %cst_29 = arith.constant dense<0.000000e+00> : vector<16x256xf32>
    %83 = tpu.matmul %0, %82, %cst_29 {dimension_numbers = #tpu.dot_dimension_numbers<[1], [0], [0], [1], [0, 0, 1, 1], [], []>} : vector<16x16xf32>, vector<16x256xf32>, vector<16x256xf32> -> vector<16x256xf32>
    %84 = vector.broadcast %1 : vector<16x1xf32> to vector<16x256xf32>
    %85 = arith.addf %83, %84 : vector<16x256xf32>
    %cst_30 = arith.constant 0.000000e+00 : f32
    %86 = vector.broadcast %cst_30 : f32 to vector<16x256xf32>
    %87 = arith.maximumf %85, %86 : vector<16x256xf32>
    %88 = vector.extract_strided_slice %87 {offsets = [0, 0], sizes = [8, 256], strides = [1, 1]} : vector<16x256xf32> to vector<8x256xf32>
    %c0_31 = arith.constant 0 : index
    %c0_32 = arith.constant 0 : index
    %89 = vector.load %arg10[%c0_31, %c0_32] : memref<16x256xf32, #tpu.memory_space<vmem>>, vector<8x256xf32>
    tpu.vector_store %arg10[%c0_31, %c0_32], %88 {strides = array<i32>} : memref<16x256xf32, #tpu.memory_space<vmem>>, vector<8x256xf32>,
    %90 = vector.extract_strided_slice %87 {offsets = [8, 0], sizes = [8, 256], strides = [1, 1]} : vector<16x256xf32> to vector<8x256xf32>
    %c1_i32_33 = arith.constant 1 : i32
    %91 = tpu.dynamic_rotate %90 by %c1_i32_33 dim 1 : vector<8x256xf32>, i32 -> vector<8x256xf32>
    %92 = vector.broadcast %7 : vector<1x256xf32> to vector<8x256xf32>
    %93 = arith.mulf %91, %92 : vector<8x256xf32>
    %c255_i32_34 = arith.constant 255 : i32
    %94 = tpu.dynamic_rotate %90 by %c255_i32_34 dim 1 : vector<8x256xf32>, i32 -> vector<8x256xf32>
    %95 = vector.broadcast %8 : vector<1x256xf32> to vector<8x256xf32>
    %96 = arith.mulf %94, %95 : vector<8x256xf32>
    %97 = vector.broadcast %11 : vector<8x1xf32> to vector<8x256xf32>
    %98 = arith.mulf %93, %97 : vector<8x256xf32>
    %99 = vector.broadcast %12 : vector<8x1xf32> to vector<8x256xf32>
    %100 = arith.mulf %90, %99 : vector<8x256xf32>
    %101 = arith.addf %98, %100 : vector<8x256xf32>
    %102 = vector.broadcast %13 : vector<8x1xf32> to vector<8x256xf32>
    %103 = arith.mulf %96, %102 : vector<8x256xf32>
    %104 = arith.addf %101, %103 : vector<8x256xf32>
    %105 = vector.broadcast %14 : vector<8x1xf32> to vector<8x256xf32>
    %106 = arith.mulf %93, %105 : vector<8x256xf32>
    %107 = vector.broadcast %15 : vector<8x1xf32> to vector<8x256xf32>
    %108 = arith.mulf %90, %107 : vector<8x256xf32>
    %109 = arith.addf %106, %108 : vector<8x256xf32>
    %110 = vector.broadcast %16 : vector<8x1xf32> to vector<8x256xf32>
    %111 = arith.mulf %96, %110 : vector<8x256xf32>
    %112 = arith.addf %109, %111 : vector<8x256xf32>
    %113 = vector.broadcast %17 : vector<8x1xf32> to vector<8x256xf32>
    %114 = arith.mulf %93, %113 : vector<8x256xf32>
    %115 = vector.broadcast %18 : vector<8x1xf32> to vector<8x256xf32>
    %116 = arith.mulf %90, %115 : vector<8x256xf32>
    %117 = arith.addf %114, %116 : vector<8x256xf32>
    %118 = vector.broadcast %19 : vector<8x1xf32> to vector<8x256xf32>
    %119 = arith.mulf %96, %118 : vector<8x256xf32>
    %120 = arith.addf %117, %119 : vector<8x256xf32>
    %c16_i32_35 = arith.constant 16 : i32
    %121 = tpu.dynamic_rotate %104 by %c16_i32_35 dim 1 : vector<8x256xf32>, i32 -> vector<8x256xf32>
    %122 = vector.broadcast %9 : vector<1x256xf32> to vector<8x256xf32>
    %123 = arith.mulf %121, %122 : vector<8x256xf32>
    %124 = arith.addf %112, %123 : vector<8x256xf32>
    %c240_i32_36 = arith.constant 240 : i32
    %125 = tpu.dynamic_rotate %120 by %c240_i32_36 dim 1 : vector<8x256xf32>, i32 -> vector<8x256xf32>
    %126 = vector.broadcast %10 : vector<1x256xf32> to vector<8x256xf32>
    %127 = arith.mulf %125, %126 : vector<8x256xf32>
    %128 = arith.addf %124, %127 : vector<8x256xf32>
    %129 = vector.broadcast %3 : vector<8x1xf32> to vector<8x256xf32>
    %130 = arith.addf %128, %129 : vector<8x256xf32>
    %c8_37 = arith.constant 8 : index
    %c0_38 = arith.constant 0 : index
    %131 = vector.load %arg10[%c8_37, %c0_38] : memref<16x256xf32, #tpu.memory_space<vmem>>, vector<8x256xf32>
    tpu.vector_store %arg10[%c8_37, %c0_38], %130 {strides = array<i32>} : memref<16x256xf32, #tpu.memory_space<vmem>>, vector<8x256xf32>,
    %c0_39 = arith.constant 0 : index
    %c0_40 = arith.constant 0 : index
    %132 = vector.load %arg10[%c0_39, %c0_40] : memref<16x256xf32, #tpu.memory_space<vmem>>, vector<16x256xf32>
    %cst_41 = arith.constant dense<0.000000e+00> : vector<16x256xf32>
    %133 = tpu.matmul %4, %132, %cst_41 {dimension_numbers = #tpu.dot_dimension_numbers<[1], [0], [0], [1], [0, 0, 1, 1], [], []>} : vector<16x16xf32>, vector<16x256xf32>, vector<16x256xf32> -> vector<16x256xf32>
    %134 = vector.broadcast %5 : vector<16x1xf32> to vector<16x256xf32>
    %135 = arith.addf %133, %134 : vector<16x256xf32>
    %cst_42 = arith.constant 0.000000e+00 : f32
    %136 = vector.broadcast %cst_42 : f32 to vector<16x256xf32>
    %137 = arith.maximumf %135, %136 : vector<16x256xf32>
    %138 = arith.addf %137, %82 : vector<16x256xf32>
    %c1_43 = arith.constant 1 : index
    %c0_44 = arith.constant 0 : index
    %c0_45 = arith.constant 0 : index
    %139 = vector.load %arg9[%c1_43, %c0_44, %c0_45] : memref<2x16x256xf32, #tpu.memory_space<vmem>>, vector<1x16x256xf32>
    %140 = vector.shape_cast %139 : vector<1x16x256xf32> to vector<16x256xf32>
    %141 = vector.shape_cast %138 : vector<16x256xf32> to vector<1x16x256xf32>
    tpu.vector_store %arg9[%c1_43, %c0_44, %c0_45], %141 {strides = array<i32>} : memref<2x16x256xf32, #tpu.memory_space<vmem>>, vector<1x16x256xf32>,
    return
  }
  func.func @transform_0(%arg0: i32) -> (i32, i32, i32) {
    %c0_i32 = arith.constant 0 : i32
    %c0_i32_0 = arith.constant 0 : i32
    %c0_i32_1 = arith.constant 0 : i32
    return %arg0, %c0_i32, %c0_i32_0 : i32, i32, i32
  }
  func.func @transform_1(%arg0: i32) -> (i32, i32) {
    %c0_i32 = arith.constant 0 : i32
    %c0_i32_0 = arith.constant 0 : i32
    %c0_i32_1 = arith.constant 0 : i32
    return %c0_i32, %c0_i32_0 : i32, i32
  }
  func.func @transform_2(%arg0: i32) -> (i32, i32) {
    %c0_i32 = arith.constant 0 : i32
    %c0_i32_0 = arith.constant 0 : i32
    %c0_i32_1 = arith.constant 0 : i32
    return %c0_i32, %c0_i32_0 : i32, i32
  }
  func.func @transform_3(%arg0: i32) -> (i32, i32) {
    %c0_i32 = arith.constant 0 : i32
    %c0_i32_0 = arith.constant 0 : i32
    %c0_i32_1 = arith.constant 0 : i32
    return %c0_i32, %c0_i32_0 : i32, i32
  }
  func.func @transform_4(%arg0: i32) -> (i32, i32) {
    %c0_i32 = arith.constant 0 : i32
    %c0_i32_0 = arith.constant 0 : i32
    %c0_i32_1 = arith.constant 0 : i32
    return %c0_i32, %c0_i32_0 : i32, i32
  }
  func.func @transform_5(%arg0: i32) -> (i32, i32) {
    %c0_i32 = arith.constant 0 : i32
    %c0_i32_0 = arith.constant 0 : i32
    %c0_i32_1 = arith.constant 0 : i32
    return %c0_i32, %c0_i32_0 : i32, i32
  }
  func.func @transform_6(%arg0: i32) -> (i32, i32) {
    %c0_i32 = arith.constant 0 : i32
    %c0_i32_0 = arith.constant 0 : i32
    %c0_i32_1 = arith.constant 0 : i32
    return %c0_i32, %c0_i32_0 : i32, i32
  }
  func.func @transform_7(%arg0: i32) -> (i32, i32) {
    %c0_i32 = arith.constant 0 : i32
    %c0_i32_0 = arith.constant 0 : i32
    %c0_i32_1 = arith.constant 0 : i32
    return %c0_i32, %c0_i32_0 : i32, i32
  }
  func.func @transform_8(%arg0: i32) -> (i32, i32, i32) {
    %c0_i32 = arith.constant 0 : i32
    %c0_i32_0 = arith.constant 0 : i32
    %c0_i32_1 = arith.constant 0 : i32
    return %arg0, %c0_i32, %c0_i32_0 : i32, i32, i32
  }
}

</mosaic_0001>

<llo_original>
// kernel: tpu_custom_call.1
$region0: #{tpu_custom_call.1}
  #allocation0 [shape = 'u32[]', space=smem, size = 0x4, offset = 0x4, fixed_abs, tag = 'smem constant byte address 0x4 - core index']
  #allocation1 [shape = 'u32[144,128]{1,0:T(1,128)}', space=vmem, size = 0x12000, scoped, tag = 'internal scratch']
  #allocation2 [shape = 'f32[16,256]{1,0:T(8,128)}', space=vmem, size = 0x4000, scoped, tag = 'scratch operand']
  %s0 = inlined_call_operand.hbm [shape: f32[4,16,256], index: 0, kind: input, shape index: {}]
  %s1 = inlined_call_operand.vmem [shape: f32[16,16], index: 1, kind: input, shape index: {}]
  %s2 = inlined_call_operand.vmem [shape: f32[16,1], index: 2, kind: input, shape index: {}]
  %s3 = inlined_call_operand.vmem [shape: f32[8,9], index: 3, kind: input, shape index: {}]
  %s4 = inlined_call_operand.vmem [shape: f32[8,1], index: 4, kind: input, shape index: {}]
  %s5 = inlined_call_operand.vmem [shape: f32[16,16], index: 5, kind: input, shape index: {}]
  %s6 = inlined_call_operand.vmem [shape: f32[16,1], index: 6, kind: input, shape index: {}]
  %s7 = inlined_call_operand.vmem [shape: f32[4,256], index: 7, kind: input, shape index: {}]
  %s8 = inlined_call_operand.hbm [shape: f32[4,16,256], index: 8, kind: output, shape index: {}]
  %s9 = sld [smem:[#allocation0]]
  $region69: #{tpu_custom_call.1} parent=0
    _
  %s11 = ssub.s32 1, %s9
  %s12 = scalar_select 0, %s11, %s9
  $region1: #{tpu_custom_call.1} parent=0
    #allocation3 [shape = 'u8[65536]{0}', space=vmem, size = 0x10000, scoped, tag = 'input window, operand 0']
    #allocation4 [shape = 's32[2]{0}', space=sflag, size = 0x8, scoped, tag = 'scoped memory for tpu_custom_call.1']
    #allocation5 [shape = 's32[2]{0}', space=sflag, size = 0x8, scoped, tag = 'scoped memory for tpu_custom_call.1']
    #allocation6 [shape = 'u8[65536]{0}', space=vmem, size = 0x10000, scoped, tag = 'output window, operand 0']
    %13 = vsyncpa [#allocation4], 0
    %s14 = scalar_lea.sflag [#allocation4], 1
    %15 = vsyncpa %s14, 0
    %16 = vsyncpa [#allocation5], 0
    %s17 = scalar_lea.sflag [#allocation5], 1
    %18 = vsyncpa %s17, 0
    loop: start=0, step=1, limit=4
    $region2: #{tpu_custom_call.1} parent=1 // loop_pre_header
      _
    $region3: #{tpu_custom_call.1} parent=1 // loop_header
      %s20 = sphi 0, %s24
      %p21 = scmp.ge.s32.totalorder %s20, 4
      %s30 = sphi 0, %s32
      %s33 = sphi 0, %s30
      %s34 = sphi 0, %s33
      %s50 = sphi 0, %s34
      %s54 = sphi 0, %s54
      %s56 = sphi 0, %s54
      %s57 = sphi 0, %s56
      %s71 = sphi 0, %s57
      %s75 = sphi 0, %s75
      %s77 = sphi 0, %s75
      %s78 = sphi 0, %s77
      %s92 = sphi 0, %s78
      %s96 = sphi 0, %s96
      %s98 = sphi 0, %s96
      %s99 = sphi 0, %s98
      %s113 = sphi 0, %s99
      %s117 = sphi 0, %s117
      %s119 = sphi 0, %s117
      %s120 = sphi 0, %s119
      %s134 = sphi 0, %s120
      %s138 = sphi 0, %s138
      %s140 = sphi 0, %s138
      %s141 = sphi 0, %s140
      %s155 = sphi 0, %s141
      %s159 = sphi 0, %s159
      %s161 = sphi 0, %s159
      %s162 = sphi 0, %s161
      %s176 = sphi 0, %s162
      %s180 = sphi 0, %s180
      %s182 = sphi 0, %s180
      %s183 = sphi 0, %s182
      %s197 = sphi 0, %s183
      %s203 = sphi 0, %s205
      %s206 = sphi 0, %s203
      %s207 = sphi 0, %s206
      %s223 = sphi 0, %s207
    $region4: #{tpu_custom_call.1} parent=1 // loop_header_branch
      %23 = sbr.rel (%p21) target = $region8
    $region5: #{tpu_custom_call.1} parent=1 // loop_body
      %s25 = ssub.s32 %s20, 1
      %s26 = ssub.s32 %s20, 2
      %s27 = sadd.s32 %s20, 1
      %s28 = ssub.s32 %s20, %s27
      %p29 = scmp.eq.s32.totalorder %s28, 0
      %s31 = sadd.s32 %s30, 1
      %s32 = scalar_select %p29, %s30, %s31
      %p35 = pneg %p29
      %p36 = scmp.eq.s32.totalorder %s20, 1
      %p37 = por %p35, %p36
      %p38 = scmp.ne.s32.totalorder %s30, %s33
      %p39 = scmp.eq.s32.totalorder %s20, 0
      %p40 = por %p38, %p39
      %p41 = scmp.ne.s32.totalorder %s30, %s33
      %p42 = scmp.eq.s32.totalorder %s25, 1
      %p43 = por %p41, %p42
      %p44 = scmp.ne.s32.totalorder %s33, %s34
      %p45 = scmp.eq.s32.totalorder %s25, 0
      %p46 = por %p44, %p45
      %p47 = scmp.ne.s32.totalorder %s33, %s34
      %p48 = scmp.eq.s32.totalorder %s26, 1
      %p49 = por %p47, %p48
      %p51 = scmp.ne.s32.totalorder %s34, %s50
      %p52 = scmp.eq.s32.totalorder %s26, 0
      %p53 = por %p51, %p52
      %s55 = sadd.s32 %s54, 1
      %p58 = scmp.eq.s32.totalorder %s20, 1
      %p59 = scmp.ne.s32.totalorder %s54, %s56
      %p60 = scmp.eq.s32.totalorder %s20, 0
      %p61 = por %p59, %p60
      %p62 = scmp.ne.s32.totalorder %s54, %s56
      %p63 = scmp.eq.s32.totalorder %s25, 1
      %p64 = por %p62, %p63
      %p65 = scmp.ne.s32.totalorder %s56, %s57
      %p66 = scmp.eq.s32.totalorder %s25, 0
      %p67 = por %p65, %p66
      %p68 = scmp.ne.s32.totalorder %s56, %s57
      %p69 = scmp.eq.s32.totalorder %s26, 1
      %p70 = por %p68, %p69
      %p72 = scmp.ne.s32.totalorder %s57, %s71
      %p73 = scmp.eq.s32.totalorder %s26, 0
      %p74 = por %p72, %p73
      %s76 = sadd.s32 %s75, 1
      %p79 = scmp.eq.s32.totalorder %s20, 1
      %p80 = scmp.ne.s32.totalorder %s75, %s77
      %p81 = scmp.eq.s32.totalorder %s20, 0
      %p82 = por %p80, %p81
      %p83 = scmp.ne.s32.totalorder %s75, %s77
      %p84 = scmp.eq.s32.totalorder %s25, 1
      %p85 = por %p83, %p84
      %p86 = scmp.ne.s32.totalorder %s77, %s78
      %p87 = scmp.eq.s32.totalorder %s25, 0
      %p88 = por %p86, %p87
      %p89 = scmp.ne.s32.totalorder %s77, %s78
      %p90 = scmp.eq.s32.totalorder %s26, 1
      %p91 = por %p89, %p90
      %p93 = scmp.ne.s32.totalorder %s78, %s92
      %p94 = scmp.eq.s32.totalorder %s26, 0
      %p95 = por %p93, %p94
      %s97 = sadd.s32 %s96, 1
      %p100 = scmp.eq.s32.totalorder %s20, 1
      %p101 = scmp.ne.s32.totalorder %s96, %s98
      %p102 = scmp.eq.s32.totalorder %s20, 0
      %p103 = por %p101, %p102
      %p104 = scmp.ne.s32.totalorder %s96, %s98
      %p105 = scmp.eq.s32.totalorder %s25, 1
      %p106 = por %p104, %p105
      %p107 = scmp.ne.s32.totalorder %s98, %s99
      %p108 = scmp.eq.s32.totalorder %s25, 0
      %p109 = por %p107, %p108
      %p110 = scmp.ne.s32.totalorder %s98, %s99
      %p111 = scmp.eq.s32.totalorder %s26, 1
      %p112 = por %p110, %p111
      %p114 = scmp.ne.s32.totalorder %s99, %s113
      %p115 = scmp.eq.s32.totalorder %s26, 0
      %p116 = por %p114, %p115
      %s118 = sadd.s32 %s117, 1
      %p121 = scmp.eq.s32.totalorder %s20, 1
      %p122 = scmp.ne.s32.totalorder %s117, %s119
      %p123 = scmp.eq.s32.totalorder %s20, 0
      %p124 = por %p122, %p123
      %p125 = scmp.ne.s32.totalorder %s117, %s119
      %p126 = scmp.eq.s32.totalorder %s25, 1
      %p127 = por %p125, %p126
      %p128 = scmp.ne.s32.totalorder %s119, %s120
      %p129 = scmp.eq.s32.totalorder %s25, 0
      %p130 = por %p128, %p129
      %p131 = scmp.ne.s32.totalorder %s119, %s120
      %p132 = scmp.eq.s32.totalorder %s26, 1
      %p133 = por %p131, %p132
      %p135 = scmp.ne.s32.totalorder %s120, %s134
      %p136 = scmp.eq.s32.totalorder %s26, 0
      %p137 = por %p135, %p136
      %s139 = sadd.s32 %s138, 1
      %p142 = scmp.eq.s32.totalorder %s20, 1
      %p143 = scmp.ne.s32.totalorder %s138, %s140
      %p144 = scmp.eq.s32.totalorder %s20, 0
      %p145 = por %p143, %p144
      %p146 = scmp.ne.s32.totalorder %s138, %s140
      %p147 = scmp.eq.s32.totalorder %s25, 1
      %p148 = por %p146, %p147
      %p149 = scmp.ne.s32.totalorder %s140, %s141
      %p150 = scmp.eq.s32.totalorder %s25, 0
      %p151 = por %p149, %p150
      %p152 = scmp.ne.s32.totalorder %s140, %s141
      %p153 = scmp.eq.s32.totalorder %s26, 1
      %p154 = por %p152, %p153
      %p156 = scmp.ne.s32.totalorder %s141, %s155
      %p157 = scmp.eq.s32.totalorder %s26, 0
      %p158 = por %p156, %p157
      %s160 = sadd.s32 %s159, 1
      %p163 = scmp.eq.s32.totalorder %s20, 1
      %p164 = scmp.ne.s32.totalorder %s159, %s161
      %p165 = scmp.eq.s32.totalorder %s20, 0
      %p166 = por %p164, %p165
      %p167 = scmp.ne.s32.totalorder %s159, %s161
      %p168 = scmp.eq.s32.totalorder %s25, 1
      %p169 = por %p167, %p168
      %p170 = scmp.ne.s32.totalorder %s161, %s162
      %p171 = scmp.eq.s32.totalorder %s25, 0
      %p172 = por %p170, %p171
      %p173 = scmp.ne.s32.totalorder %s161, %s162
      %p174 = scmp.eq.s32.totalorder %s26, 1
      %p175 = por %p173, %p174
      %p177 = scmp.ne.s32.totalorder %s162, %s176
      %p178 = scmp.eq.s32.totalorder %s26, 0
      %p179 = por %p177, %p178
      %s181 = sadd.s32 %s180, 1
      %p184 = scmp.eq.s32.totalorder %s20, 1
      %p185 = scmp.ne.s32.totalorder %s180, %s182
      %p186 = scmp.eq.s32.totalorder %s20, 0
      %p187 = por %p185, %p186
      %p188 = scmp.ne.s32.totalorder %s180, %s182
      %p189 = scmp.eq.s32.totalorder %s25, 1
      %p190 = por %p188, %p189
      %p191 = scmp.ne.s32.totalorder %s182, %s183
      %p192 = scmp.eq.s32.totalorder %s25, 0
      %p193 = por %p191, %p192
      %p194 = scmp.ne.s32.totalorder %s182, %s183
      %p195 = scmp.eq.s32.totalorder %s26, 1
      %p196 = por %p194, %p195
      %p198 = scmp.ne.s32.totalorder %s183, %s197
      %p199 = scmp.eq.s32.totalorder %s26, 0
      %p200 = por %p198, %p199
      %s201 = ssub.s32 %s20, %s27
      %p202 = scmp.eq.s32.totalorder %s201, 0
      %s204 = sadd.s32 %s203, 1
      %s205 = scalar_select %p202, %s203, %s204
      %p208 = pneg %p202
      %p209 = scmp.eq.s32.totalorder %s20, 1
      %p210 = por %p208, %p209
      %p211 = scmp.ne.s32.totalorder %s203, %s206
      %p212 = scmp.eq.s32.totalorder %s20, 0
      %p213 = por %p211, %p212
      %p214 = scmp.ne.s32.totalorder %s203, %s206
      %p215 = scmp.eq.s32.totalorder %s25, 1
      %p216 = por %p214, %p215
      %p217 = scmp.ne.s32.totalorder %s206, %s207
      %p218 = scmp.eq.s32.totalorder %s25, 0
      %p219 = por %p217, %p218
      %p220 = scmp.ne.s32.totalorder %s206, %s207
      %p221 = scmp.eq.s32.totalorder %s26, 1
      %p222 = por %p220, %p221
      %p224 = scmp.ne.s32.totalorder %s207, %s223
      %p225 = scmp.eq.s32.totalorder %s26, 0
      %p226 = por %p224, %p225
      %p227 = scmp.le.s32.totalorder 1, %s20
      %p228 = scmp.lt.s32.totalorder %s20, 3
      %p229 = pnand %p227, %p228
      %p230 = pneg %p229
      // Predicated region
      $region9: #{tpu_custom_call.1} parent=5 // pred_check
        _
      $region10: #{tpu_custom_call.1} parent=5 // pred_check_branch
        %232 = sbr.rel (%p229) target = $region12
      $region11: #{tpu_custom_call.1} parent=5 // pred_region
        %s233 = ssub.s32 %s20, 1
        // Predicated region
        $region13: #{tpu_custom_call.1} parent=11 // pred_check
          %p234 = pneg %p67
        $region14: #{tpu_custom_call.1} parent=11 // pred_check_branch
          %236 = sbr.rel (%p234) target = $region16
        $region15: #{tpu_custom_call.1} parent=11 // pred_region
          _
        $region16: #{tpu_custom_call.1} parent=11 // pred_fallthru
          _
        // Predicated region
        $region17: #{tpu_custom_call.1} parent=11 // pred_check
          %p237 = pneg %p88
        $region18: #{tpu_custom_call.1} parent=11 // pred_check_branch
          %239 = sbr.rel (%p237) target = $region20
        $region19: #{tpu_custom_call.1} parent=11 // pred_region
          _
        $region20: #{tpu_custom_call.1} parent=11 // pred_fallthru
          _
        // Predicated region
        $region21: #{tpu_custom_call.1} parent=11 // pred_check
          %p240 = pneg %p109
        $region22: #{tpu_custom_call.1} parent=11 // pred_check_branch
          %242 = sbr.rel (%p240) target = $region24
        $region23: #{tpu_custom_call.1} parent=11 // pred_region
          _
        $region24: #{tpu_custom_call.1} parent=11 // pred_fallthru
          _
        // Predicated region
        $region25: #{tpu_custom_call.1} parent=11 // pred_check
          %p243 = pneg %p130
        $region26: #{tpu_custom_call.1} parent=11 // pred_check_branch
          %245 = sbr.rel (%p243) target = $region28
        $region27: #{tpu_custom_call.1} parent=11 // pred_region
          _
        $region28: #{tpu_custom_call.1} parent=11 // pred_fallthru
          _
        // Predicated region
        $region29: #{tpu_custom_call.1} parent=11 // pred_check
          %p246 = pneg %p151
        $region30: #{tpu_custom_call.1} parent=11 // pred_check_branch
          %248 = sbr.rel (%p246) target = $region32
        $region31: #{tpu_custom_call.1} parent=11 // pred_region
          _
        $region32: #{tpu_custom_call.1} parent=11 // pred_fallthru
          _
        // Predicated region
        $region33: #{tpu_custom_call.1} parent=11 // pred_check
          %p249 = pneg %p172
        $region34: #{tpu_custom_call.1} parent=11 // pred_check_branch
          %251 = sbr.rel (%p249) target = $region36
        $region35: #{tpu_custom_call.1} parent=11 // pred_region
          _
        $region36: #{tpu_custom_call.1} parent=11 // pred_fallthru
          _
        // Predicated region
        $region37: #{tpu_custom_call.1} parent=11 // pred_check
          %p252 = pneg %p193
        $region38: #{tpu_custom_call.1} parent=11 // pred_check_branch
          %254 = sbr.rel (%p252) target = $region40
        $region39: #{tpu_custom_call.1} parent=11 // pred_region
          _
        $region40: #{tpu_custom_call.1} parent=11 // pred_fallthru
          _
      $region12: #{tpu_custom_call.1} parent=5 // pred_fallthru
        _
      %p255 = scmp.lt.s32.totalorder %s20, 2
      // Predicated region
      $region41: #{tpu_custom_call.1} parent=5 // pred_check
        %p256 = pneg %p255
      $region42: #{tpu_custom_call.1} parent=5 // pred_check_branch
        %258 = sbr.rel (%p256) target = $region44
      $region43: #{tpu_custom_call.1} parent=5 // pred_region
        // Predicated region
        $region45: #{tpu_custom_call.1} parent=43 // pred_check
          %p259 = pneg %p40
        $region46: #{tpu_custom_call.1} parent=43 // pred_check_branch
          %261 = sbr.rel (%p259) target = $region48
        $region47: #{tpu_custom_call.1} parent=43 // pred_region
          %s262 = sand.u32 %s30, 1
          %s263 = scalar_lea.sflag [#allocation4], %s262
          %s264 = sand.u32 %s30, 1
          %s265 = smul.addr %s264, 64
          %s266 = scalar_lea.vmem [#allocation3], %s265
          %s267 = smul.u32 2, %s20
          %s269 = ssub.s32 1024, 1024
          %270 = vsyncadd %s263, %s269
          %s271 = smul.addr %s267, 4
          %s272 = smul.addr %s271, 128
          %s273 = scalar_lea.hbm %s0, %s272
          %s274 = sshll.u32 %s266, 4
          %s275 = int_to_ptr.vmem [resolvable:$true] %s274
          %280 = dma.hbm_to_vmem [thread:$0]  %s273, 1024, %s275, %s263, 256, 256, 16
        $region48: #{tpu_custom_call.1} parent=43 // pred_fallthru
          _
      $region44: #{tpu_custom_call.1} parent=5 // pred_fallthru
        _
      %p281 = scmp.le.s32.totalorder 1, %s20
      %p282 = scmp.lt.s32.totalorder %s20, 3
      %p283 = pnand %p281, %p282
      %p284 = pneg %p283
      // Predicated region
      $region49: #{tpu_custom_call.1} parent=5 // pred_check
        _
      $region50: #{tpu_custom_call.1} parent=5 // pred_check_branch
        %286 = sbr.rel (%p283) target = $region52
      $region51: #{tpu_custom_call.1} parent=5 // pred_region
        %s287 = ssub.s32 %s20, 1
        %s288 = sand.u32 %s33, 1
        %s289 = scalar_lea.sflag [#allocation4], %s288
        %s290 = sand.u32 %s33, 1
        %s291 = smul.addr %s290, 64
        %s292 = scalar_lea.vmem [#allocation3], %s291
        // Predicated region
        $region53: #{tpu_custom_call.1} parent=51 // pred_check
          %p293 = pneg %p46
        $region54: #{tpu_custom_call.1} parent=51 // pred_check_branch
          %295 = sbr.rel (%p293) target = $region56
        $region55: #{tpu_custom_call.1} parent=51 // pred_region
          %296 = dma.done %s289, 1024
        $region56: #{tpu_custom_call.1} parent=51 // pred_fallthru
          _
        %s297 = sand.u32 %s33, 1
        %s298 = scalar_lea.sflag [#allocation4], %s297
        %s299 = sand.u32 %s33, 1
        %s300 = smul.addr %s299, 64
        %s301 = scalar_lea.vmem [#allocation3], %s300
        %p302 = pneg %p46
        %p303 = pneg %p43
        %p304 = pneg %p67
        %p305 = pneg %p64
        %p306 = pneg %p88
        %p307 = pneg %p85
        %p308 = pneg %p109
        %p309 = pneg %p106
        %p310 = pneg %p130
        %p311 = pneg %p127
        %p312 = pneg %p151
        %p313 = pneg %p148
        %p314 = pneg %p172
        %p315 = pneg %p169
        %p316 = pneg %p193
        %p317 = pneg %p190
        %p318 = pneg %p219
        %p319 = pneg %p216
        %s320 = sand.u32 %s206, 1
        %s321 = scalar_lea.sflag [#allocation5], %s320
        %s322 = sand.u32 %s206, 1
        %s323 = smul.addr %s322, 64
        %s324 = scalar_lea.vmem [#allocation6], %s323
        %s325 = smul.u32 2, %s25
        %s326 = smul.u32 2, %s25
        %v327 = vld [vmem:[%s1] sm:$0xff]
        %v328 = vld [vmem:[%s1 + $0x8] sm:$0xff]
        %v329 = vld [vmem:[%s2] sm:$0xff]
        %v330 = vld [vmem:[%s2 + $0x8] sm:$0xff]
        %v331 = vld [vmem:[%s3] sm:$0xff]
        %v332 = vld [vmem:[%s4] sm:$0xff]
        %v333 = vld [vmem:[%s5] sm:$0xff]
        %v334 = vld [vmem:[%s5 + $0x8] sm:$0xff]
        %v335 = vld [vmem:[%s6] sm:$0xff]
        %v336 = vld [vmem:[%s6 + $0x8] sm:$0xff]
        %v337 = vld [vmem:[%s7] sm:$0xff]
        %v338 = vld [vmem:[%s292] sm:$0xff]
        %v339 = vld [vmem:[%s292 + $0x8] sm:$0xff]
        %v340 = vld [vmem:[%s292 + $0x10] sm:$0xff]
        %v341 = vld [vmem:[%s292 + $0x18] sm:$0xff]
        %343 = vset.pattern.permute.xlu0 0
        %344 = vperm.xlu0 %343, %v329
        %v345 = vpop.permute.xlu0 %344
        %348 = vset.pattern.permute.xlu0 0
        %349 = vperm.xlu0 %348, %v330
        %v350 = vpop.permute.xlu0 %349
        %vm352 = vcmask 130048
        %v354 = vsel %vm352, %v327, 0
        %v357 = vsel %vm352, %v328, 0
        %359 = vmatprep.subr.mxu0 %v339
        %360 = vmatpush1.msra.mxu0 %v338
        %361 = vmatprep.subr.mxu0 %v341
        %362 = vmatpush1.msra.mxu0 %v340
        %363 = vmatprep.subr.mxu0 0.0
        %364 = vmatpush1.msra.mxu0 0.0
        %365 = vmatprep.subr.mxu0 0.0
        %366 = vmatpush1.msra.mxu0 0.0
        %367 = vmatprep.subr.mxu0 0.0
        %368 = vmatpush1.msra.mxu0 0.0
        %369 = vmatprep.subr.mxu0 0.0
        %370 = vmatpush1.msra.mxu0 0.0
        %371 = vmatprep.subr.mxu0 0.0
        %372 = vmatpush1.msra.mxu0 0.0
        %373 = vmatprep.subr.mxu0 0.0
        %374 = vmatpush1.msra.mxu0 0.0
        %375 = vmatprep.subr.mxu0 0.0
        %376 = vmatpush1.msra.mxu0 0.0
        %377 = vmatprep.subr.mxu0 0.0
        %378 = vmatpush1.msra.mxu0 0.0
        %379 = vmatprep.subr.mxu0 0.0
        %380 = vmatpush1.msra.mxu0 0.0
        %381 = vmatprep.subr.mxu0 0.0
        %382 = vmatpush1.msra.mxu0 0.0
        %383 = vmatprep.subr.mxu0 0.0
        %384 = vmatpush1.msra.mxu0 0.0
        %385 = vmatprep.subr.mxu0 0.0
        %386 = vmatpush1.msra.mxu0 0.0
        %387 = vmatprep.subr.mxu0 0.0
        %388 = vmatpush1.msra.mxu0 0.0
        %389 = vmatprep.subr.mxu0 0.0
        %390 = vmatpush1.msra.mxu0 0.0
        %391 = vmatprep.subr.mxu0 0.0
        %392 = vmatpush1.msra.mxu0 0.0
        %393 = vmatprep.subr.mxu0 0.0
        %394 = vmatpush1.msra.mxu0 0.0
        %395 = vmatprep.subr.mxu0 0.0
        %396 = vmatpush1.msra.mxu0 0.0
        %397 = vmatprep.subr.mxu0 0.0
        %398 = vmatpush1.msra.mxu0 0.0
        %399 = vmatprep.subr.mxu0 0.0
        %400 = vmatpush1.msra.mxu0 0.0
        %401 = vmatprep.subr.mxu0 0.0
        %402 = vmatpush1.msra.mxu0 0.0
        %403 = vmatprep.subr.mxu0 0.0
        %404 = vmatpush1.msra.mxu0 0.0
        %405 = vmatprep.subr.mxu0 0.0
        %406 = vmatpush1.msra.mxu0 0.0
        %407 = vmatprep.subr.mxu0 0.0
        %408 = vmatpush1.msra.mxu0 0.0
        %409 = vmatprep.subr.mxu0 0.0
        %410 = vmatpush1.msra.mxu0 0.0
        %411 = vmatprep.subr.mxu0 0.0
        %412 = vmatpush1.msra.mxu0 0.0
        %413 = vmatprep.subr.mxu0 0.0
        %414 = vmatpush1.msra.mxu0 0.0
        %415 = vmatprep.subr.mxu0 0.0
        %416 = vmatpush1.msra.mxu0 0.0
        %417 = vmatprep.subr.mxu0 0.0
        %418 = vmatpush1.msra.mxu0 0.0
        %419 = vmatprep.subr.mxu0 0.0
        %420 = vmatpush1.msra.mxu0 0.0
        %421 = vmatprep.subr.mxu0 0.0
        %422 = vmatpush1.msra.mxu0 0.0
        %423 = vmatprep.mubr.f32.mxu0 0.0
        %424 = vmatmul.mubr.f32.gmra.mrb[0].mxu0 %v354
        %v425 = vpop.f32.mrb[0].mxu0
        %v426 = vadd.f32 %v345, %v425
        %v427 = vpop.f32.mrb[0].mxu0
        %v428 = vadd.f32 %v345, %v427
        %429 = vmatprep.mubr.f32.mxu0 0.0
        %430 = vmatmul.mubr.f32.gmra.mrb[0].mxu0 %v357
        %v431 = vpop.f32.mrb[0].mxu0
        %v432 = vadd.f32 %v350, %v431
        %v433 = vpop.f32.mrb[0].mxu0
        %v434 = vadd.f32 %v350, %v433
        %435 = vdwg.mxu0
        %v436 = vmax.f32 %v426, 0.0
        %v437 = vmax.f32 %v428, 0.0
        %v438 = vmax.f32 %v432, 0.0
        %v439 = vmax.f32 %v434, 0.0
        %440 = vst [vmem:[#allocation2] sm:$0xff] %v436
        %441 = vst [vmem:[#allocation2 + $0x8] sm:$0xff] %v437
        %442 = vrot.lane.b32.xlu0 %v438, 1
        %v443 = vpop.permute.xlu0 %442
        %444 = vrot.lane.b32.xlu0 %v439, 1
        %v445 = vpop.permute.xlu0 %444
        %v446 = vlaneseq
        %v447 = vand.u32 %v446, 127
        %vm448 = vcmp.lt.s32.totalorder %v447, 1
        %v449 = vsel %vm448, %v443, %v445
        %v450 = vsel %vm448, %v445, %v443
        %v452 = vlaneseq
        %v453 = vshrl.u32 %v452, 7
        %v454 = vsub.s32 0, %v453
        %v455 = vrot.slane %v337, %v454
        %v456 = vlaneseq
        %v457 = vshrl.u32 %v456, 7
        %v458 = vsub.s32 4, %v457
        %v459 = vrot.slane %v337, %v458
        %v462 = vlaneseq
        %v463 = vshrl.u32 %v462, 7
        %v464 = vsub.s32 0, %v463
        %v465 = vrot.slane %v455, %v464
        %v466 = vlaneseq
        %v467 = vshrl.u32 %v466, 7
        %v468 = vsub.s32 0, %v467
        %v469 = vrot.slane %v459, %v468
        %v470 = vmul.f32 %v450, %v465
        %v471 = vmul.f32 %v449, %v469
        %472 = vrot.lane.b32.xlu0 %v438, 127
        %v473 = vpop.permute.xlu0 %472
        %474 = vrot.lane.b32.xlu0 %v439, 127
        %v475 = vpop.permute.xlu0 %474
        %vm476 = vcmp.lt.s32.totalorder %v447, 127
        %v477 = vsel %vm476, %v473, %v475
        %v478 = vsel %vm476, %v475, %v473
        %v479 = vlaneseq
        %v480 = vshrl.u32 %v479, 7
        %v481 = vsub.s32 1, %v480
        %v482 = vrot.slane %v337, %v481
        %v483 = vlaneseq
        %v484 = vshrl.u32 %v483, 7
        %v485 = vsub.s32 5, %v484
        %v486 = vrot.slane %v337, %v485
        %v489 = vlaneseq
        %v490 = vshrl.u32 %v489, 7
        %v491 = vsub.s32 1, %v490
        %v492 = vrot.slane %v482, %v491
        %v493 = vlaneseq
        %v494 = vshrl.u32 %v493, 7
        %v495 = vsub.s32 1, %v494
        %v496 = vrot.slane %v486, %v495
        %v497 = vmul.f32 %v477, %v492
        %v498 = vmul.f32 %v478, %v496
        %500 = vset.pattern.permute.xlu0 0
        %501 = vperm.xlu0 %500, %v331
        %v502 = vpop.permute.xlu0 %501
        %v504 = vmul.f32 %v470, %v502
        %v505 = vmul.f32 %v471, %v502
        %506 = vset.pattern.permute.xlu0 1
        %507 = vperm.xlu0 %506, %v331
        %v508 = vpop.permute.xlu0 %507
        %v510 = vmul.f32 %v438, %v508
        %v511 = vmul.f32 %v439, %v508
        %v512 = vadd.f32 %v504, %v510
        %v513 = vadd.f32 %v505, %v511
        %514 = vset.pattern.permute.xlu0 2
        %515 = vperm.xlu0 %514, %v331
        %v516 = vpop.permute.xlu0 %515
        %v518 = vmul.f32 %v497, %v516
        %v519 = vmul.f32 %v498, %v516
        %v520 = vadd.f32 %v512, %v518
        %v521 = vadd.f32 %v513, %v519
        %522 = vset.pattern.permute.xlu0 3
        %523 = vperm.xlu0 %522, %v331
        %v524 = vpop.permute.xlu0 %523
        %v526 = vmul.f32 %v470, %v524
        %v527 = vmul.f32 %v471, %v524
        %528 = vset.pattern.permute.xlu0 4
        %529 = vperm.xlu0 %528, %v331
        %v530 = vpop.permute.xlu0 %529
        %v532 = vmul.f32 %v438, %v530
        %v533 = vmul.f32 %v439, %v530
        %v534 = vadd.f32 %v526, %v532
        %v535 = vadd.f32 %v527, %v533
        %536 = vset.pattern.permute.xlu0 5
        %537 = vperm.xlu0 %536, %v331
        %v538 = vpop.permute.xlu0 %537
        %v540 = vmul.f32 %v497, %v538
        %v541 = vmul.f32 %v498, %v538
        %v542 = vadd.f32 %v534, %v540
        %v543 = vadd.f32 %v535, %v541
        %544 = vset.pattern.permute.xlu0 6
        %545 = vperm.xlu0 %544, %v331
        %v546 = vpop.permute.xlu0 %545
        %v548 = vmul.f32 %v470, %v546
        %v549 = vmul.f32 %v471, %v546
        %550 = vset.pattern.permute.xlu0 7
        %551 = vperm.xlu0 %550, %v331
        %v552 = vpop.permute.xlu0 %551
        %v554 = vmul.f32 %v438, %v552
        %v555 = vmul.f32 %v439, %v552
        %v556 = vadd.f32 %v548, %v554
        %v557 = vadd.f32 %v549, %v555
        %558 = vset.pattern.permute.xlu0 8
        %559 = vperm.xlu0 %558, %v331
        %v560 = vpop.permute.xlu0 %559
        %v562 = vmul.f32 %v497, %v560
        %v563 = vmul.f32 %v498, %v560
        %v564 = vadd.f32 %v556, %v562
        %v565 = vadd.f32 %v557, %v563
        %566 = vrot.lane.b32.xlu0 %v520, 16
        %v567 = vpop.permute.xlu0 %566
        %568 = vrot.lane.b32.xlu0 %v521, 16
        %v569 = vpop.permute.xlu0 %568
        %vm570 = vcmp.lt.s32.totalorder %v447, 16
        %v571 = vsel %vm570, %v567, %v569
        %v572 = vsel %vm570, %v569, %v567
        %v573 = vlaneseq
        %v574 = vshrl.u32 %v573, 7
        %v575 = vsub.s32 2, %v574
        %v576 = vrot.slane %v337, %v575
        %v577 = vlaneseq
        %v578 = vshrl.u32 %v577, 7
        %v579 = vsub.s32 6, %v578
        %v580 = vrot.slane %v337, %v579
        %v583 = vlaneseq
        %v584 = vshrl.u32 %v583, 7
        %v585 = vsub.s32 2, %v584
        %v586 = vrot.slane %v576, %v585
        %v587 = vlaneseq
        %v588 = vshrl.u32 %v587, 7
        %v589 = vsub.s32 2, %v588
        %v590 = vrot.slane %v580, %v589
        %v591 = vmul.f32 %v572, %v586
        %v592 = vmul.f32 %v571, %v590
        %v593 = vadd.f32 %v542, %v591
        %v594 = vadd.f32 %v543, %v592
        %595 = vrot.lane.b32.xlu0 %v564, 112
        %v596 = vpop.permute.xlu0 %595
        %597 = vrot.lane.b32.xlu0 %v565, 112
        %v598 = vpop.permute.xlu0 %597
        %vm599 = vcmp.lt.s32.totalorder %v447, 112
        %v600 = vsel %vm599, %v596, %v598
        %v601 = vsel %vm599, %v598, %v596
        %v602 = vlaneseq
        %v603 = vshrl.u32 %v602, 7
        %v604 = vsub.s32 3, %v603
        %v605 = vrot.slane %v337, %v604
        %v606 = vlaneseq
        %v607 = vshrl.u32 %v606, 7
        %v608 = vsub.s32 7, %v607
        %v609 = vrot.slane %v337, %v608
        %v612 = vlaneseq
        %v613 = vshrl.u32 %v612, 7
        %v614 = vsub.s32 3, %v613
        %v615 = vrot.slane %v605, %v614
        %v616 = vlaneseq
        %v617 = vshrl.u32 %v616, 7
        %v618 = vsub.s32 3, %v617
        %v619 = vrot.slane %v609, %v618
        %v620 = vmul.f32 %v600, %v615
        %v621 = vmul.f32 %v601, %v619
        %v622 = vadd.f32 %v593, %v620
        %v623 = vadd.f32 %v594, %v621
        %625 = vset.pattern.permute.xlu0 0
        %626 = vperm.xlu0 %625, %v332
        %v627 = vpop.permute.xlu0 %626
        %v629 = vadd.f32 %v622, %v627
        %v630 = vadd.f32 %v623, %v627
        %631 = vst [vmem:[#allocation2 + $0x10] sm:$0xff] %v629
        %632 = vst [vmem:[#allocation2 + $0x18] sm:$0xff] %v630
        %v633 = vld [vmem:[#allocation2] sm:$0xff]
        %v634 = vld [vmem:[#allocation2 + $0x8] sm:$0xff]
        %v635 = vld [vmem:[#allocation2 + $0x10] sm:$0xff]
        %v636 = vld [vmem:[#allocation2 + $0x18] sm:$0xff]
        %638 = vset.pattern.permute.xlu0 0
        %639 = vperm.xlu0 %638, %v335
        %v640 = vpop.permute.xlu0 %639
        %643 = vset.pattern.permute.xlu0 0
        %644 = vperm.xlu0 %643, %v336
        %v645 = vpop.permute.xlu0 %644
        %v648 = vsel %vm352, %v333, 0
        %v651 = vsel %vm352, %v334, 0
        %653 = vmatprep.subr.mxu0 %v634
        %654 = vmatpush1.msra.mxu0 %v633
        %655 = vmatprep.subr.mxu0 %v636
        %656 = vmatpush1.msra.mxu0 %v635
        %657 = vmatprep.subr.mxu0 0.0
        %658 = vmatpush1.msra.mxu0 0.0
        %659 = vmatprep.subr.mxu0 0.0
        %660 = vmatpush1.msra.mxu0 0.0
        %661 = vmatprep.subr.mxu0 0.0
        %662 = vmatpush1.msra.mxu0 0.0
        %663 = vmatprep.subr.mxu0 0.0
        %664 = vmatpush1.msra.mxu0 0.0
        %665 = vmatprep.subr.mxu0 0.0
        %666 = vmatpush1.msra.mxu0 0.0
        %667 = vmatprep.subr.mxu0 0.0
        %668 = vmatpush1.msra.mxu0 0.0
        %669 = vmatprep.subr.mxu0 0.0
        %670 = vmatpush1.msra.mxu0 0.0
        %671 = vmatprep.subr.mxu0 0.0
        %672 = vmatpush1.msra.mxu0 0.0
        %673 = vmatprep.subr.mxu0 0.0
        %674 = vmatpush1.msra.mxu0 0.0
        %675 = vmatprep.subr.mxu0 0.0
        %676 = vmatpush1.msra.mxu0 0.0
        %677 = vmatprep.subr.mxu0 0.0
        %678 = vmatpush1.msra.mxu0 0.0
        %679 = vmatprep.subr.mxu0 0.0
        %680 = vmatpush1.msra.mxu0 0.0
        %681 = vmatprep.subr.mxu0 0.0
        %682 = vmatpush1.msra.mxu0 0.0
        %683 = vmatprep.subr.mxu0 0.0
        %684 = vmatpush1.msra.mxu0 0.0
        %685 = vmatprep.subr.mxu0 0.0
        %686 = vmatpush1.msra.mxu0 0.0
        %687 = vmatprep.subr.mxu0 0.0
        %688 = vmatpush1.msra.mxu0 0.0
        %689 = vmatprep.subr.mxu0 0.0
        %690 = vmatpush1.msra.mxu0 0.0
        %691 = vmatprep.subr.mxu0 0.0
        %692 = vmatpush1.msra.mxu0 0.0
        %693 = vmatprep.subr.mxu0 0.0
        %694 = vmatpush1.msra.mxu0 0.0
        %695 = vmatprep.subr.mxu0 0.0
        %696 = vmatpush1.msra.mxu0 0.0
        %697 = vmatprep.subr.mxu0 0.0
        %698 = vmatpush1.msra.mxu0 0.0
        %699 = vmatprep.subr.mxu0 0.0
        %700 = vmatpush1.msra.mxu0 0.0
        %701 = vmatprep.subr.mxu0 0.0
        %702 = vmatpush1.msra.mxu0 0.0
        %703 = vmatprep.subr.mxu0 0.0
        %704 = vmatpush1.msra.mxu0 0.0
        %705 = vmatprep.subr.mxu0 0.0
        %706 = vmatpush1.msra.mxu0 0.0
        %707 = vmatprep.subr.mxu0 0.0
        %708 = vmatpush1.msra.mxu0 0.0
        %709 = vmatprep.subr.mxu0 0.0
        %710 = vmatpush1.msra.mxu0 0.0
        %711 = vmatprep.subr.mxu0 0.0
        %712 = vmatpush1.msra.mxu0 0.0
        %713 = vmatprep.subr.mxu0 0.0
        %714 = vmatpush1.msra.mxu0 0.0
        %715 = vmatprep.subr.mxu0 0.0
        %716 = vmatpush1.msra.mxu0 0.0
        %717 = vmatprep.mubr.f32.mxu0 0.0
        %718 = vmatmul.mubr.f32.gmra.mrb[0].mxu0 %v648
        %v719 = vpop.f32.mrb[0].mxu0
        %v720 = vadd.f32 %v640, %v719
        %v721 = vpop.f32.mrb[0].mxu0
        %v722 = vadd.f32 %v640, %v721
        %723 = vmatprep.mubr.f32.mxu0 0.0
        %724 = vmatmul.mubr.f32.gmra.mrb[0].mxu0 %v651
        %v725 = vpop.f32.mrb[0].mxu0
        %v726 = vadd.f32 %v645, %v725
        %v727 = vpop.f32.mrb[0].mxu0
        %v728 = vadd.f32 %v645, %v727
        %729 = vdwg.mxu0
        %v730 = vmax.f32 %v720, 0.0
        %v731 = vmax.f32 %v722, 0.0
        %v732 = vmax.f32 %v726, 0.0
        %v733 = vmax.f32 %v728, 0.0
        %v734 = vadd.f32 %v730, %v338
        %v735 = vadd.f32 %v731, %v339
        %v736 = vadd.f32 %v732, %v340
        %v737 = vadd.f32 %v733, %v341
        %738 = vst [vmem:[%s324] sm:$0xff] %v734
        %739 = vst [vmem:[%s324 + $0x8] sm:$0xff] %v735
        %740 = vst [vmem:[%s324 + $0x10] sm:$0xff] %v736
        %741 = vst [vmem:[%s324 + $0x18] sm:$0xff] %v737
        %s742 = scalar_lea.vmem %s292, 32 [#allocation3]
        %v743 = vld [vmem:[%s742] sm:$0xff]
        %v744 = vld [vmem:[%s742 + $0x8] sm:$0xff]
        %v745 = vld [vmem:[%s742 + $0x10] sm:$0xff]
        %v746 = vld [vmem:[%s742 + $0x18] sm:$0xff]
        %747 = vmatprep.subr.mxu0 %v744
        %748 = vmatpush1.msra.mxu0 %v743
        %749 = vmatprep.subr.mxu0 %v746
        %750 = vmatpush1.msra.mxu0 %v745
        %751 = vmatprep.subr.mxu0 0.0
        %752 = vmatpush1.msra.mxu0 0.0
        %753 = vmatprep.subr.mxu0 0.0
        %754 = vmatpush1.msra.mxu0 0.0
        %755 = vmatprep.subr.mxu0 0.0
        %756 = vmatpush1.msra.mxu0 0.0
        %757 = vmatprep.subr.mxu0 0.0
        %758 = vmatpush1.msra.mxu0 0.0
        %759 = vmatprep.subr.mxu0 0.0
        %760 = vmatpush1.msra.mxu0 0.0
        %761 = vmatprep.subr.mxu0 0.0
        %762 = vmatpush1.msra.mxu0 0.0
        %763 = vmatprep.subr.mxu0 0.0
        %764 = vmatpush1.msra.mxu0 0.0
        %765 = vmatprep.subr.mxu0 0.0
        %766 = vmatpush1.msra.mxu0 0.0
        %767 = vmatprep.subr.mxu0 0.0
        %768 = vmatpush1.msra.mxu0 0.0
        %769 = vmatprep.subr.mxu0 0.0
        %770 = vmatpush1.msra.mxu0 0.0
        %771 = vmatprep.subr.mxu0 0.0
        %772 = vmatpush1.msra.mxu0 0.0
        %773 = vmatprep.subr.mxu0 0.0
        %774 = vmatpush1.msra.mxu0 0.0
        %775 = vmatprep.subr.mxu0 0.0
        %776 = vmatpush1.msra.mxu0 0.0
        %777 = vmatprep.subr.mxu0 0.0
        %778 = vmatpush1.msra.mxu0 0.0
        %779 = vmatprep.subr.mxu0 0.0
        %780 = vmatpush1.msra.mxu0 0.0
        %781 = vmatprep.subr.mxu0 0.0
        %782 = vmatpush1.msra.mxu0 0.0
        %783 = vmatprep.subr.mxu0 0.0
        %784 = vmatpush1.msra.mxu0 0.0
        %785 = vmatprep.subr.mxu0 0.0
        %786 = vmatpush1.msra.mxu0 0.0
        %787 = vmatprep.subr.mxu0 0.0
        %788 = vmatpush1.msra.mxu0 0.0
        %789 = vmatprep.subr.mxu0 0.0
        %790 = vmatpush1.msra.mxu0 0.0
        %791 = vmatprep.subr.mxu0 0.0
        %792 = vmatpush1.msra.mxu0 0.0
        %793 = vmatprep.subr.mxu0 0.0
        %794 = vmatpush1.msra.mxu0 0.0
        %795 = vmatprep.subr.mxu0 0.0
        %796 = vmatpush1.msra.mxu0 0.0
        %797 = vmatprep.subr.mxu0 0.0
        %798 = vmatpush1.msra.mxu0 0.0
        %799 = vmatprep.subr.mxu0 0.0
        %800 = vmatpush1.msra.mxu0 0.0
        %801 = vmatprep.subr.mxu0 0.0
        %802 = vmatpush1.msra.mxu0 0.0
        %803 = vmatprep.subr.mxu0 0.0
        %804 = vmatpush1.msra.mxu0 0.0
        %805 = vmatprep.subr.mxu0 0.0
        %806 = vmatpush1.msra.mxu0 0.0
        %807 = vmatprep.subr.mxu0 0.0
        %808 = vmatpush1.msra.mxu0 0.0
        %809 = vmatprep.subr.mxu0 0.0
        %810 = vmatpush1.msra.mxu0 0.0
        %811 = vmatprep.mubr.f32.mxu0 0.0
        %812 = vmatmul.mubr.f32.gmra.mrb[0].mxu0 %v354
        %v813 = vpop.f32.mrb[0].mxu0
        %v814 = vadd.f32 %v345, %v813
        %v815 = vpop.f32.mrb[0].mxu0
        %v816 = vadd.f32 %v345, %v815
        %817 = vmatprep.mubr.f32.mxu0 0.0
        %818 = vmatmul.mubr.f32.gmra.mrb[0].mxu0 %v357
        %v819 = vpop.f32.mrb[0].mxu0
        %v820 = vadd.f32 %v350, %v819
        %v821 = vpop.f32.mrb[0].mxu0
        %v822 = vadd.f32 %v350, %v821
        %823 = vdwg.mxu0
        %v824 = vmax.f32 %v814, 0.0
        %v825 = vmax.f32 %v816, 0.0
        %v826 = vmax.f32 %v820, 0.0
        %v827 = vmax.f32 %v822, 0.0
        %828 = vst [vmem:[#allocation2] sm:$0xff] %v824
        %829 = vst [vmem:[#allocation2 + $0x8] sm:$0xff] %v825
        %830 = vrot.lane.b32.xlu0 %v826, 1
        %v831 = vpop.permute.xlu0 %830
        %832 = vrot.lane.b32.xlu0 %v827, 1
        %v833 = vpop.permute.xlu0 %832
        %v834 = vsel %vm448, %v831, %v833
        %v835 = vsel %vm448, %v833, %v831
        %v836 = vmul.f32 %v835, %v465
        %v837 = vmul.f32 %v834, %v469
        %838 = vrot.lane.b32.xlu0 %v826, 127
        %v839 = vpop.permute.xlu0 %838
        %840 = vrot.lane.b32.xlu0 %v827, 127
        %v841 = vpop.permute.xlu0 %840
        %v842 = vsel %vm476, %v839, %v841
        %v843 = vsel %vm476, %v841, %v839
        %v844 = vmul.f32 %v842, %v492
        %v845 = vmul.f32 %v843, %v496
        %v846 = vmul.f32 %v836, %v502
        %v847 = vmul.f32 %v837, %v502
        %v848 = vmul.f32 %v826, %v508
        %v849 = vmul.f32 %v827, %v508
        %v850 = vadd.f32 %v846, %v848
        %v851 = vadd.f32 %v847, %v849
        %v852 = vmul.f32 %v844, %v516
        %v853 = vmul.f32 %v845, %v516
        %v854 = vadd.f32 %v850, %v852
        %v855 = vadd.f32 %v851, %v853
        %v856 = vmul.f32 %v836, %v524
        %v857 = vmul.f32 %v837, %v524
        %v858 = vmul.f32 %v826, %v530
        %v859 = vmul.f32 %v827, %v530
        %v860 = vadd.f32 %v856, %v858
        %v861 = vadd.f32 %v857, %v859
        %v862 = vmul.f32 %v844, %v538
        %v863 = vmul.f32 %v845, %v538
        %v864 = vadd.f32 %v860, %v862
        %v865 = vadd.f32 %v861, %v863
        %v866 = vmul.f32 %v836, %v546
        %v867 = vmul.f32 %v837, %v546
        %v868 = vmul.f32 %v826, %v552
        %v869 = vmul.f32 %v827, %v552
        %v870 = vadd.f32 %v866, %v868
        %v871 = vadd.f32 %v867, %v869
        %v872 = vmul.f32 %v844, %v560
        %v873 = vmul.f32 %v845, %v560
        %v874 = vadd.f32 %v870, %v872
        %v875 = vadd.f32 %v871, %v873
        %876 = vrot.lane.b32.xlu0 %v854, 16
        %v877 = vpop.permute.xlu0 %876
        %878 = vrot.lane.b32.xlu0 %v855, 16
        %v879 = vpop.permute.xlu0 %878
        %v880 = vsel %vm570, %v877, %v879
        %v881 = vsel %vm570, %v879, %v877
        %v882 = vmul.f32 %v881, %v586
        %v883 = vmul.f32 %v880, %v590
        %v884 = vadd.f32 %v864, %v882
        %v885 = vadd.f32 %v865, %v883
        %886 = vrot.lane.b32.xlu0 %v874, 112
        %v887 = vpop.permute.xlu0 %886
        %888 = vrot.lane.b32.xlu0 %v875, 112
        %v889 = vpop.permute.xlu0 %888
        %v890 = vsel %vm599, %v887, %v889
        %v891 = vsel %vm599, %v889, %v887
        %v892 = vmul.f32 %v890, %v615
        %v893 = vmul.f32 %v891, %v619
        %v894 = vadd.f32 %v884, %v892
        %v895 = vadd.f32 %v885, %v893
        %v896 = vadd.f32 %v894, %v627
        %v897 = vadd.f32 %v895, %v627
        %898 = vst [vmem:[#allocation2 + $0x10] sm:$0xff] %v896
        %899 = vst [vmem:[#allocation2 + $0x18] sm:$0xff] %v897
        %v900 = vld [vmem:[#allocation2] sm:$0xff]
        %v901 = vld [vmem:[#allocation2 + $0x8] sm:$0xff]
        %v902 = vld [vmem:[#allocation2 + $0x10] sm:$0xff]
        %v903 = vld [vmem:[#allocation2 + $0x18] sm:$0xff]
        %904 = vmatprep.subr.mxu0 %v901
        %905 = vmatpush1.msra.mxu0 %v900
        %906 = vmatprep.subr.mxu0 %v903
        %907 = vmatpush1.msra.mxu0 %v902
        %908 = vmatprep.subr.mxu0 0.0
        %909 = vmatpush1.msra.mxu0 0.0
        %910 = vmatprep.subr.mxu0 0.0
        %911 = vmatpush1.msra.mxu0 0.0
        %912 = vmatprep.subr.mxu0 0.0
        %913 = vmatpush1.msra.mxu0 0.0
        %914 = vmatprep.subr.mxu0 0.0
        %915 = vmatpush1.msra.mxu0 0.0
        %916 = vmatprep.subr.mxu0 0.0
        %917 = vmatpush1.msra.mxu0 0.0
        %918 = vmatprep.subr.mxu0 0.0
        %919 = vmatpush1.msra.mxu0 0.0
        %920 = vmatprep.subr.mxu0 0.0
        %921 = vmatpush1.msra.mxu0 0.0
        %922 = vmatprep.subr.mxu0 0.0
        %923 = vmatpush1.msra.mxu0 0.0
        %924 = vmatprep.subr.mxu0 0.0
        %925 = vmatpush1.msra.mxu0 0.0
        %926 = vmatprep.subr.mxu0 0.0
        %927 = vmatpush1.msra.mxu0 0.0
        %928 = vmatprep.subr.mxu0 0.0
        %929 = vmatpush1.msra.mxu0 0.0
        %930 = vmatprep.subr.mxu0 0.0
        %931 = vmatpush1.msra.mxu0 0.0
        %932 = vmatprep.subr.mxu0 0.0
        %933 = vmatpush1.msra.mxu0 0.0
        %934 = vmatprep.subr.mxu0 0.0
        %935 = vmatpush1.msra.mxu0 0.0
        %936 = vmatprep.subr.mxu0 0.0
        %937 = vmatpush1.msra.mxu0 0.0
        %938 = vmatprep.subr.mxu0 0.0
        %939 = vmatpush1.msra.mxu0 0.0
        %940 = vmatprep.subr.mxu0 0.0
        %941 = vmatpush1.msra.mxu0 0.0
        %942 = vmatprep.subr.mxu0 0.0
        %943 = vmatpush1.msra.mxu0 0.0
        %944 = vmatprep.subr.mxu0 0.0
        %945 = vmatpush1.msra.mxu0 0.0
        %946 = vmatprep.subr.mxu0 0.0
        %947 = vmatpush1.msra.mxu0 0.0
        %948 = vmatprep.subr.mxu0 0.0
        %949 = vmatpush1.msra.mxu0 0.0
        %950 = vmatprep.subr.mxu0 0.0
        %951 = vmatpush1.msra.mxu0 0.0
        %952 = vmatprep.subr.mxu0 0.0
        %953 = vmatpush1.msra.mxu0 0.0
        %954 = vmatprep.subr.mxu0 0.0
        %955 = vmatpush1.msra.mxu0 0.0
        %956 = vmatprep.subr.mxu0 0.0
        %957 = vmatpush1.msra.mxu0 0.0
        %958 = vmatprep.subr.mxu0 0.0
        %959 = vmatpush1.msra.mxu0 0.0
        %960 = vmatprep.subr.mxu0 0.0
        %961 = vmatpush1.msra.mxu0 0.0
        %962 = vmatprep.subr.mxu0 0.0
        %963 = vmatpush1.msra.mxu0 0.0
        %964 = vmatprep.subr.mxu0 0.0
        %965 = vmatpush1.msra.mxu0 0.0
        %966 = vmatprep.subr.mxu0 0.0
        %967 = vmatpush1.msra.mxu0 0.0
        %968 = vmatprep.mubr.f32.mxu0 0.0
        %969 = vmatmul.mubr.f32.gmra.mrb[0].mxu0 %v648
        %v970 = vpop.f32.mrb[0].mxu0
        %v971 = vadd.f32 %v640, %v970
        %v972 = vpop.f32.mrb[0].mxu0
        %v973 = vadd.f32 %v640, %v972
        %974 = vmatprep.mubr.f32.mxu0 0.0
        %975 = vmatmul.mubr.f32.gmra.mrb[0].mxu0 %v651
        %v976 = vpop.f32.mrb[0].mxu0
        %v977 = vadd.f32 %v645, %v976
        %v978 = vpop.f32.mrb[0].mxu0
        %v979 = vadd.f32 %v645, %v978
        %980 = vdwg.mxu0
        %v981 = vmax.f32 %v971, 0.0
        %v982 = vmax.f32 %v973, 0.0
        %v983 = vmax.f32 %v977, 0.0
        %v984 = vmax.f32 %v979, 0.0
        %v985 = vadd.f32 %v981, %v743
        %v986 = vadd.f32 %v982, %v744
        %v987 = vadd.f32 %v983, %v745
        %v988 = vadd.f32 %v984, %v746
        %s989 = scalar_lea.vmem %s324, 32 [#allocation6]
        %990 = vst [vmem:[%s989] sm:$0xff] %v985
        %991 = vst [vmem:[%s989 + $0x8] sm:$0xff] %v986
        %992 = vst [vmem:[%s989 + $0x10] sm:$0xff] %v987
        %993 = vst [vmem:[%s989 + $0x18] sm:$0xff] %v988
        %s994 = sand.u32 %s206, 1
        %s995 = scalar_lea.sflag [#allocation5], %s994
        %s996 = sand.u32 %s206, 1
        %s997 = smul.addr %s996, 64
        %s998 = scalar_lea.vmem [#allocation6], %s997
        // Predicated region
        $region57: #{tpu_custom_call.1} parent=51 // pred_check
          %p999 = pneg %p216
        $region58: #{tpu_custom_call.1} parent=51 // pred_check_branch
          %1001 = sbr.rel (%p999) target = $region60
        $region59: #{tpu_custom_call.1} parent=51 // pred_region
          %s1002 = smul.u32 2, %s25
          %s1004 = ssub.s32 1024, 1024
          %1005 = vsyncadd %s995, %s1004
          %s1006 = smul.addr %s1002, 4
          %s1007 = smul.addr %s1006, 128
          %s1008 = scalar_lea.hbm %s8, %s1007
          %s1009 = sshll.u32 %s998, 4
          %s1010 = int_to_ptr.vmem [resolvable:$true] %s1009
          %1015 = dma.vmem_to_hbm [thread:$0]  %s1010, 1024, %s1008, %s995, 256, 256, 16
        $region60: #{tpu_custom_call.1} parent=51 // pred_fallthru
          _
      $region52: #{tpu_custom_call.1} parent=5 // pred_fallthru
        _
      %p1016 = scmp.le.s32.totalorder 2, %s20
      // Predicated region
      $region61: #{tpu_custom_call.1} parent=5 // pred_check
        %p1017 = pneg %p1016
      $region62: #{tpu_custom_call.1} parent=5 // pred_check_branch
        %1019 = sbr.rel (%p1017) target = $region64
      $region63: #{tpu_custom_call.1} parent=5 // pred_region
        %s1020 = ssub.s32 %s20, 2
        // Predicated region
        $region65: #{tpu_custom_call.1} parent=63 // pred_check
          %p1021 = pneg %p222
        $region66: #{tpu_custom_call.1} parent=63 // pred_check_branch
          %1023 = sbr.rel (%p1021) target = $region68
        $region67: #{tpu_custom_call.1} parent=63 // pred_region
          %s1024 = sand.u32 %s207, 1
          %s1025 = scalar_lea.sflag [#allocation5], %s1024
          %s1026 = sand.u32 %s207, 1
          %s1027 = smul.addr %s1026, 64
          %s1028 = scalar_lea.vmem [#allocation6], %s1027
          %1029 = dma.done %s1025, 1024
        $region68: #{tpu_custom_call.1} parent=63 // pred_fallthru
          _
      $region64: #{tpu_custom_call.1} parent=5 // pred_fallthru
        _
    $region6: #{tpu_custom_call.1} parent=1 // loop_footer
      %s24 = sadd.s32 1, %s20
    $region7: #{tpu_custom_call.1} parent=1 // loop_footer_branch
      %19 = sbr.rel target = $region3
    $region8: #{tpu_custom_call.1} parent=1 // loop_exit
      _
    %1030 = vsyncpa [#allocation4], 1
    %s1031 = scalar_lea.sflag [#allocation4], 1
    %1032 = vsyncpa %s1031, 1
    %1033 = vsyncpa [#allocation5], 1
    %s1034 = scalar_lea.sflag [#allocation5], 1
    %1035 = vsyncpa %s1034, 1

</llo_original>
